<compile_context>
chip_gen: v6e
topology: v6e:2x2x1
jax: 0.10.0
libtpu: 0.0.40
codegen_flags: <defaults>
</compile_context>

<pallas_src>
import functools

import jax
import jax.numpy as jnp
from jax import lax
from jax.experimental import pallas as pl
from jax.experimental.pallas import tpu as pltpu


# --------------------------------------------------------------------------
# Fused kernel: 5 MXU matmuls + bias adds + EUP sigmoids, all in VMEM.
# --------------------------------------------------------------------------
def _sigmoid(v):
    # sigmoid(x) == 0.5 * (tanh(x/2) + 1): tanh runs on the EUP (own bundle
    # slot), avoiding a full-precision VALU divide.
    return 0.5 * (jnp.tanh(0.5 * v) + 1.0)


def lenet_kernel(x_ref, w1_ref, b1_ref, w2_ref, b2_ref, w3_ref, b3_ref,
                 w4_ref, b4_ref, w5_ref, b5_ref, o_ref):
    f32 = jnp.float32
    x = x_ref[...]                                                   # (TB, Din)
    # conv1 (Toeplitz) + bias -> sigmoid
    h = _sigmoid(jnp.dot(x, w1_ref[...], preferred_element_type=f32) + b1_ref[...])
    # [pool1 folded into conv2]: conv2 + bias -> sigmoid
    h = _sigmoid(jnp.dot(h, w2_ref[...], preferred_element_type=f32) + b2_ref[...])
    # [pool2 + flatten folded into fc1]: fc1 -> sigmoid
    h = _sigmoid(jnp.dot(h, w3_ref[...], preferred_element_type=f32) + b3_ref[...])
    # fc2 -> sigmoid
    h = _sigmoid(jnp.dot(h, w4_ref[...], preferred_element_type=f32) + b4_ref[...])
    # fc3 (lane-dense padded output)
    o_ref[...] = jnp.dot(h, w5_ref[...], preferred_element_type=f32) + b5_ref[...]


# --------------------------------------------------------------------------
# One-time parameter lowering (runs once, outside the per-call path).
# --------------------------------------------------------------------------
def _round_up(n, m=128):
    return ((n + m - 1) // m) * m


def _pad2d(mat, rows, cols):
    r, c = mat.shape
    return jnp.pad(mat.astype(jnp.float32), ((0, rows - r), (0, cols - c)))


def _conv1d_toeplitz(w, l_in, pad):
    """(Cout, Cin, K) conv1d weight -> dense (Cin*l_in, Cout*l_out) matrix."""
    c_out, c_in, k = w.shape
    l_out = l_in + 2 * pad - k + 1
    l = jnp.arange(l_in)[:, None]                     # (l_in, 1)
    t = jnp.arange(l_out)[None, :]                    # (1, l_out)
    tap = l - t + pad                                 # tap index k = l - t + pad
    valid = (tap >= 0) & (tap < k)
    tap_c = jnp.clip(tap, 0, k - 1)
    w_t = jnp.transpose(w, (1, 2, 0))                 # (Cin, K, Cout)
    g = w_t[:, tap_c, :]                              # (Cin, l_in, l_out, Cout)
    g = jnp.where(valid[None, :, :, None], g, 0.0)
    g = jnp.transpose(g, (0, 1, 3, 2))                # (Cin, l_in, Cout, l_out)
    return g.reshape(c_in * l_in, c_out * l_out).astype(jnp.float32), l_out


def _avg_pool_matrix(channels, l_in):
    """avg_pool1d(kernel=2, stride=2, floor) as (C*l_in, C*l_out) matrix."""
    l_out = l_in // 2
    i = jnp.arange(l_in)[:, None]
    p = jnp.arange(l_out)[None, :]
    m = jnp.where((i // 2) == p, 0.5, 0.0).astype(jnp.float32)   # odd tail dropped (floor)
    mat = jnp.einsum("ab,ij->aibj", jnp.eye(channels, dtype=jnp.float32), m)
    return mat.reshape(channels * l_in, channels * l_out), l_out


def prepare_kernel_params(params, input_length, pad1=2):
    """Lower PyTorch-layout params to lane-padded, pre-folded matrices."""
    c_in = params["conv1_w"].shape[1]

    w1mat, l1 = _conv1d_toeplitz(params["conv1_w"], input_length, pad1)  # (Cin*L, 6*L1)
    p1mat, lp1 = _avg_pool_matrix(6, l1)                                 # (6*L1, 6*Lp1)
    w2mat, l2 = _conv1d_toeplitz(params["conv2_w"], lp1, 0)              # (6*Lp1, 16*L2)
    p2mat, _ = _avg_pool_matrix(16, l2)                                  # (16*L2, 16*Lp2)

    # Fold linear stages with no nonlinearity between them:
    #   (h @ p1) @ w2 == h @ (p1 @ w2),  (h @ p2) @ fc1ᵀ == h @ (p2 @ fc1ᵀ)
    fc1wT = params["fc1_w"].T.astype(jnp.float32)        # (16*Lp2, 120)
    w2f = jnp.dot(p1mat, w2mat)                          # (6*L1, 16*L2)
    w3f = jnp.dot(p2mat, fc1wT)                          # (16*L2, 120)

    b1row = jnp.repeat(params["conv1_b"], l1)[None, :]
    b2row = jnp.repeat(params["conv2_b"], l2)[None, :]
    fc2wT = params["fc2_w"].T.astype(jnp.float32)        # (120, 84)
    fc3wT = params["fc3_w"].T.astype(jnp.float32)        # (84, classes)

    # Lane-pad all dims to multiples of 128.  Zero padding means the 0.5
    # outputs of sigmoid on padded columns always multiply zero rows of the
    # next matrix — no leakage into real outputs.
    d_in = _round_up(c_in * input_length)
    d1 = _round_up(6 * l1)
    d2 = _round_up(16 * l2)
    d3 = _round_up(fc1wT.shape[1])
    d4 = _round_up(fc2wT.shape[1])
    d_out = _round_up(fc3wT.shape[1])

    return dict(
        w1=_pad2d(w1mat, d_in, d1), b1=_pad2d(b1row, 1, d1),
        w2=_pad2d(w2f, d1, d2),     b2=_pad2d(b2row, 1, d2),
        w3=_pad2d(w3f, d2, d3),     b3=_pad2d(params["fc1_b"][None, :], 1, d3),
        w4=_pad2d(fc2wT, d3, d4),   b4=_pad2d(params["fc2_b"][None, :], 1, d4),
        w5=_pad2d(fc3wT, d4, d_out), b5=_pad2d(params["fc3_b"][None, :], 1, d_out),
    )


# --------------------------------------------------------------------------
# Forward wrapper: one pallas_call, batch-parallel grid.
# --------------------------------------------------------------------------
@functools.partial(jax.jit, static_argnames=("num_classes", "batch_tile"))
def lenet_forward(x, kp, num_classes, batch_tile=512):
    b, c_in, l = x.shape
    d_in = kp["w1"].shape[0]
    d_out = kp["w5"].shape[1]

    x_flat = x.reshape(b, c_in * l)               # contiguous: metadata-only reshape
    if c_in * l < d_in:
        x_flat = jnp.pad(x_flat, ((0, 0), (0, d_in - c_in * l)))   # lane-pad input

    # Batch tiling: big tiles to feed the MXU; keep >=2 parallel grid steps
    # when the batch allows it so v7x's two TensorCores both get work.
    if b > batch_tile:
        tb = batch_tile
    elif b % 2 == 0 and b // 2 >= 8:
        tb = b // 2
    else:
        tb = b
    assert b % tb == 0, "batch must be divisible by the batch tile"

    weight_names = ("w1", "b1", "w2", "b2", "w3", "b3", "w4", "b4", "w5", "b5")
    w_args = [kp[k] for k in weight_names]

    in_specs = [pl.BlockSpec((tb, d_in), lambda i: (i, 0))]
    in_specs += [pl.BlockSpec(kp[k].shape, lambda i: (0, 0)) for k in weight_names]

    out_padded = pl.pallas_call(
        lenet_kernel,
        out_shape=jax.ShapeDtypeStruct((b, d_out), jnp.float32),
        grid=(b // tb,),
        in_specs=in_specs,
        out_specs=pl.BlockSpec((tb, d_out), lambda i: (i, 0)),
        compiler_params=pltpu.CompilerParams(
            dimension_semantics=("parallel",)),
    )(x_flat, *w_args)
    return out_padded[:, :num_classes]            # trivial wrapper-side slice


# --------------------------------------------------------------------------
# Pure-JAX reference (matches the PyTorch module) + init.
# --------------------------------------------------------------------------
def lenet_reference(x, params, pad1=2):
    def conv1d(y, w, bias, pad):
        out = lax.conv_general_dilated(
            y, w, window_strides=(1,), padding=[(pad, pad)],
            dimension_numbers=("NCH", "OIH", "NCH"))
        return out + bias[None, :, None]

    def avg_pool(y):
        lp = y.shape[-1] // 2
        return 0.5 * (y[..., 0:2 * lp:2] + y[..., 1:2 * lp:2])

    y = avg_pool(jax.nn.sigmoid(conv1d(x, params["conv1_w"], params["conv1_b"], pad1)))
    y = avg_pool(jax.nn.sigmoid(conv1d(y, params["conv2_w"], params["conv2_b"], 0)))
    y = y.reshape(y.shape[0], -1)
    y = jax.nn.sigmoid(y @ params["fc1_w"].T + params["fc1_b"])
    y = jax.nn.sigmoid(y @ params["fc2_w"].T + params["fc2_b"])
    return y @ params["fc3_w"].T + params["fc3_b"]


def init_params(key, input_channels, num_classes, k1, k2, linear_size):
    ks = jax.random.split(key, 10)
    n = lambda k, shape, s=0.1: (s * jax.random.normal(k, shape)).astype(jnp.float32)
    return {
        "conv1_w": n(ks[0], (6, input_channels, k1)),
        "conv1_b": n(ks[1], (6,)),
        "conv2_w": n(ks[2], (16, 6, k2)),
        "conv2_b": n(ks[3], (16,)),
        "fc1_w": n(ks[4], (120, linear_size)),
        "fc1_b": n(ks[5], (120,)),
        "fc2_w": n(ks[6], (84, 120)),
        "fc2_b": n(ks[7], (84,)),
        "fc3_w": n(ks[8], (num_classes, 84)),
        "fc3_b": n(ks[9], (num_classes,)),
    }


if __name__ == "__main__":
    # Small, self-consistent shapes:
    #   x: (B=2, Cin=3, L=32); conv1 k=5 pad=2 -> 32 -> pool -> 16
    #   conv2 k=3 -> 14 -> pool -> 7; flatten = 16 * 7 = 112
    B, Cin, L = 2, 3, 32
    num_classes = 10
    k1, pad1, k2 = 5, 2, 3
    L1 = L + 2 * pad1 - k1 + 1
    Lp1 = L1 // 2
    L2 = Lp1 - k2 + 1
    Lp2 = L2 // 2
    linear_size = 16 * Lp2  # 112

    key = jax.random.PRNGKey(0)
    pkey, xkey = jax.random.split(key)
    params = init_params(pkey, Cin, num_classes, k1, k2, linear_size)
    x = jax.random.normal(xkey, (B, Cin, L), dtype=jnp.float32)

    kp = prepare_kernel_params(params, L, pad1=pad1)
    out = lenet_forward(x, kp, num_classes)
    jax.block_until_ready(out)
    assert out.shape == (B, num_classes)

    ref = lenet_reference(x, params, pad1=pad1)
    assert jnp.allclose(out, ref, atol=1e-3, rtol=1e-3), (
        float(jnp.max(jnp.abs(out - ref))))
    print("KERNEL_OK")
</pallas_src>

<mosaic_0001>
module attributes {stable_mosaic.version = 11 : i64} {
  func.func @lenet_kernel(%arg0: i32, %arg1: memref<2x128xf32, #tpu.memory_space<vmem>>, %arg2: memref<128x256xf32, #tpu.memory_space<vmem>>, %arg3: memref<1x256xf32, #tpu.memory_space<vmem>>, %arg4: memref<256x256xf32, #tpu.memory_space<vmem>>, %arg5: memref<1x256xf32, #tpu.memory_space<vmem>>, %arg6: memref<256x128xf32, #tpu.memory_space<vmem>>, %arg7: memref<1x128xf32, #tpu.memory_space<vmem>>, %arg8: memref<128x128xf32, #tpu.memory_space<vmem>>, %arg9: memref<1x128xf32, #tpu.memory_space<vmem>>, %arg10: memref<128x128xf32, #tpu.memory_space<vmem>>, %arg11: memref<1x128xf32, #tpu.memory_space<vmem>>, %arg12: memref<2x128xf32, #tpu.memory_space<vmem>>) attributes {dimension_semantics = [#tpu.dimension_semantics<parallel>], iteration_bounds = array<i64: 1>, scalar_prefetch = 0 : i64, scratch_operands = 0 : i64, tpu.core_type = #tpu.core_type<tc>, window_params = [{transform_indices = @transform_0, window_bounds = array<i64: 2, 128>}, {pipeline_mode = #tpu.pipeline_mode<synchronous>, transform_indices = @transform_1, window_bounds = array<i64: 128, 256>}, {pipeline_mode = #tpu.pipeline_mode<synchronous>, transform_indices = @transform_2, window_bounds = array<i64: 1, 256>}, {pipeline_mode = #tpu.pipeline_mode<synchronous>, transform_indices = @transform_3, window_bounds = array<i64: 256, 256>}, {pipeline_mode = #tpu.pipeline_mode<synchronous>, transform_indices = @transform_4, window_bounds = array<i64: 1, 256>}, {pipeline_mode = #tpu.pipeline_mode<synchronous>, transform_indices = @transform_5, window_bounds = array<i64: 256, 128>}, {pipeline_mode = #tpu.pipeline_mode<synchronous>, transform_indices = @transform_6, window_bounds = array<i64: 1, 128>}, {pipeline_mode = #tpu.pipeline_mode<synchronous>, transform_indices = @transform_7, window_bounds = array<i64: 128, 128>}, {pipeline_mode = #tpu.pipeline_mode<synchronous>, transform_indices = @transform_8, window_bounds = array<i64: 1, 128>}, {pipeline_mode = #tpu.pipeline_mode<synchronous>, transform_indices = @transform_9, window_bounds = array<i64: 128, 128>}, {pipeline_mode = #tpu.pipeline_mode<synchronous>, transform_indices = @transform_10, window_bounds = array<i64: 1, 128>}, {transform_indices = @transform_11, window_bounds = array<i64: 2, 128>}]} {
    %c0 = arith.constant 0 : index
    %c0_0 = arith.constant 0 : index
    %0 = vector.load %arg1[%c0, %c0_0] : memref<2x128xf32, #tpu.memory_space<vmem>>, vector<2x128xf32>
    %c0_1 = arith.constant 0 : index
    %c0_2 = arith.constant 0 : index
    %1 = vector.load %arg2[%c0_1, %c0_2] : memref<128x256xf32, #tpu.memory_space<vmem>>, vector<128x256xf32>
    %cst = arith.constant dense<0.000000e+00> : vector<2x256xf32>
    %2 = tpu.matmul %0, %1, %cst {dimension_numbers = #tpu.dot_dimension_numbers<[1], [0], [0], [1], [0, 0, 1, 1], [], []>} : vector<2x128xf32>, vector<128x256xf32>, vector<2x256xf32> -> vector<2x256xf32>
    %c0_3 = arith.constant 0 : index
    %c0_4 = arith.constant 0 : index
    %3 = vector.load %arg3[%c0_3, %c0_4] : memref<1x256xf32, #tpu.memory_space<vmem>>, vector<1x256xf32>
    %4 = vector.broadcast %3 : vector<1x256xf32> to vector<2x256xf32>
    %5 = arith.addf %2, %4 : vector<2x256xf32>
    %cst_5 = arith.constant 5.000000e-01 : f32
    %6 = vector.broadcast %cst_5 : f32 to vector<2x256xf32>
    %7 = arith.mulf %6, %5 : vector<2x256xf32>
    %8 = math.tanh %7 : vector<2x256xf32>
    %cst_6 = arith.constant 1.000000e+00 : f32
    %9 = vector.broadcast %cst_6 : f32 to vector<2x256xf32>
    %10 = arith.addf %8, %9 : vector<2x256xf32>
    %cst_7 = arith.constant 5.000000e-01 : f32
    %11 = vector.broadcast %cst_7 : f32 to vector<2x256xf32>
    %12 = arith.mulf %11, %10 : vector<2x256xf32>
    %c0_8 = arith.constant 0 : index
    %c0_9 = arith.constant 0 : index
    %13 = vector.load %arg4[%c0_8, %c0_9] : memref<256x256xf32, #tpu.memory_space<vmem>>, vector<256x256xf32>
    %cst_10 = arith.constant dense<0.000000e+00> : vector<2x256xf32>
    %14 = tpu.matmul %12, %13, %cst_10 {dimension_numbers = #tpu.dot_dimension_numbers<[1], [0], [0], [1], [0, 0, 1, 1], [], []>} : vector<2x256xf32>, vector<256x256xf32>, vector<2x256xf32> -> vector<2x256xf32>
    %c0_11 = arith.constant 0 : index
    %c0_12 = arith.constant 0 : index
    %15 = vector.load %arg5[%c0_11, %c0_12] : memref<1x256xf32, #tpu.memory_space<vmem>>, vector<1x256xf32>
    %16 = vector.broadcast %15 : vector<1x256xf32> to vector<2x256xf32>
    %17 = arith.addf %14, %16 : vector<2x256xf32>
    %cst_13 = arith.constant 5.000000e-01 : f32
    %18 = vector.broadcast %cst_13 : f32 to vector<2x256xf32>
    %19 = arith.mulf %18, %17 : vector<2x256xf32>
    %20 = math.tanh %19 : vector<2x256xf32>
    %cst_14 = arith.constant 1.000000e+00 : f32
    %21 = vector.broadcast %cst_14 : f32 to vector<2x256xf32>
    %22 = arith.addf %20, %21 : vector<2x256xf32>
    %cst_15 = arith.constant 5.000000e-01 : f32
    %23 = vector.broadcast %cst_15 : f32 to vector<2x256xf32>
    %24 = arith.mulf %23, %22 : vector<2x256xf32>
    %c0_16 = arith.constant 0 : index
    %c0_17 = arith.constant 0 : index
    %25 = vector.load %arg6[%c0_16, %c0_17] : memref<256x128xf32, #tpu.memory_space<vmem>>, vector<256x128xf32>
    %cst_18 = arith.constant dense<0.000000e+00> : vector<2x128xf32>
    %26 = tpu.matmul %24, %25, %cst_18 {dimension_numbers = #tpu.dot_dimension_numbers<[1], [0], [0], [1], [0, 0, 1, 1], [], []>} : vector<2x256xf32>, vector<256x128xf32>, vector<2x128xf32> -> vector<2x128xf32>
    %c0_19 = arith.constant 0 : index
    %c0_20 = arith.constant 0 : index
    %27 = vector.load %arg7[%c0_19, %c0_20] : memref<1x128xf32, #tpu.memory_space<vmem>>, vector<1x128xf32>
    %28 = vector.broadcast %27 : vector<1x128xf32> to vector<2x128xf32>
    %29 = arith.addf %26, %28 : vector<2x128xf32>
    %cst_21 = arith.constant 5.000000e-01 : f32
    %30 = vector.broadcast %cst_21 : f32 to vector<2x128xf32>
    %31 = arith.mulf %30, %29 : vector<2x128xf32>
    %32 = math.tanh %31 : vector<2x128xf32>
    %cst_22 = arith.constant 1.000000e+00 : f32
    %33 = vector.broadcast %cst_22 : f32 to vector<2x128xf32>
    %34 = arith.addf %32, %33 : vector<2x128xf32>
    %cst_23 = arith.constant 5.000000e-01 : f32
    %35 = vector.broadcast %cst_23 : f32 to vector<2x128xf32>
    %36 = arith.mulf %35, %34 : vector<2x128xf32>
    %c0_24 = arith.constant 0 : index
    %c0_25 = arith.constant 0 : index
    %37 = vector.load %arg8[%c0_24, %c0_25] : memref<128x128xf32, #tpu.memory_space<vmem>>, vector<128x128xf32>
    %cst_26 = arith.constant dense<0.000000e+00> : vector<2x128xf32>
    %38 = tpu.matmul %36, %37, %cst_26 {dimension_numbers = #tpu.dot_dimension_numbers<[1], [0], [0], [1], [0, 0, 1, 1], [], []>} : vector<2x128xf32>, vector<128x128xf32>, vector<2x128xf32> -> vector<2x128xf32>
    %c0_27 = arith.constant 0 : index
    %c0_28 = arith.constant 0 : index
    %39 = vector.load %arg9[%c0_27, %c0_28] : memref<1x128xf32, #tpu.memory_space<vmem>>, vector<1x128xf32>
    %40 = vector.broadcast %39 : vector<1x128xf32> to vector<2x128xf32>
    %41 = arith.addf %38, %40 : vector<2x128xf32>
    %cst_29 = arith.constant 5.000000e-01 : f32
    %42 = vector.broadcast %cst_29 : f32 to vector<2x128xf32>
    %43 = arith.mulf %42, %41 : vector<2x128xf32>
    %44 = math.tanh %43 : vector<2x128xf32>
    %cst_30 = arith.constant 1.000000e+00 : f32
    %45 = vector.broadcast %cst_30 : f32 to vector<2x128xf32>
    %46 = arith.addf %44, %45 : vector<2x128xf32>
    %cst_31 = arith.constant 5.000000e-01 : f32
    %47 = vector.broadcast %cst_31 : f32 to vector<2x128xf32>
    %48 = arith.mulf %47, %46 : vector<2x128xf32>
    %c0_32 = arith.constant 0 : index
    %c0_33 = arith.constant 0 : index
    %49 = vector.load %arg10[%c0_32, %c0_33] : memref<128x128xf32, #tpu.memory_space<vmem>>, vector<128x128xf32>
    %cst_34 = arith.constant dense<0.000000e+00> : vector<2x128xf32>
    %50 = tpu.matmul %48, %49, %cst_34 {dimension_numbers = #tpu.dot_dimension_numbers<[1], [0], [0], [1], [0, 0, 1, 1], [], []>} : vector<2x128xf32>, vector<128x128xf32>, vector<2x128xf32> -> vector<2x128xf32>
    %c0_35 = arith.constant 0 : index
    %c0_36 = arith.constant 0 : index
    %51 = vector.load %arg11[%c0_35, %c0_36] : memref<1x128xf32, #tpu.memory_space<vmem>>, vector<1x128xf32>
    %52 = vector.broadcast %51 : vector<1x128xf32> to vector<2x128xf32>
    %53 = arith.addf %50, %52 : vector<2x128xf32>
    %c0_37 = arith.constant 0 : index
    %c0_38 = arith.constant 0 : index
    %54 = vector.load %arg12[%c0_37, %c0_38] : memref<2x128xf32, #tpu.memory_space<vmem>>, vector<2x128xf32>
    tpu.vector_store %arg12[%c0_37, %c0_38], %53 {strides = array<i32>} : memref<2x128xf32, #tpu.memory_space<vmem>>, vector<2x128xf32>,
    return
  }
  func.func @transform_0(%arg0: i32) -> (i32, i32) {
    %c0_i32 = arith.constant 0 : i32
    %c0_i32_0 = arith.constant 0 : i32
    return %arg0, %c0_i32 : i32, i32
  }
  func.func @transform_1(%arg0: i32) -> (i32, i32) {
    %c0_i32 = arith.constant 0 : i32
    %c0_i32_0 = arith.constant 0 : i32
    %c0_i32_1 = arith.constant 0 : i32
    return %c0_i32, %c0_i32_0 : i32, i32
  }
  func.func @transform_2(%arg0: i32) -> (i32, i32) {
    %c0_i32 = arith.constant 0 : i32
    %c0_i32_0 = arith.constant 0 : i32
    %c0_i32_1 = arith.constant 0 : i32
    return %c0_i32, %c0_i32_0 : i32, i32
  }
  func.func @transform_3(%arg0: i32) -> (i32, i32) {
    %c0_i32 = arith.constant 0 : i32
    %c0_i32_0 = arith.constant 0 : i32
    %c0_i32_1 = arith.constant 0 : i32
    return %c0_i32, %c0_i32_0 : i32, i32
  }
  func.func @transform_4(%arg0: i32) -> (i32, i32) {
    %c0_i32 = arith.constant 0 : i32
    %c0_i32_0 = arith.constant 0 : i32
    %c0_i32_1 = arith.constant 0 : i32
    return %c0_i32, %c0_i32_0 : i32, i32
  }
  func.func @transform_5(%arg0: i32) -> (i32, i32) {
    %c0_i32 = arith.constant 0 : i32
    %c0_i32_0 = arith.constant 0 : i32
    %c0_i32_1 = arith.constant 0 : i32
    return %c0_i32, %c0_i32_0 : i32, i32
  }
  func.func @transform_6(%arg0: i32) -> (i32, i32) {
    %c0_i32 = arith.constant 0 : i32
    %c0_i32_0 = arith.constant 0 : i32
    %c0_i32_1 = arith.constant 0 : i32
    return %c0_i32, %c0_i32_0 : i32, i32
  }
  func.func @transform_7(%arg0: i32) -> (i32, i32) {
    %c0_i32 = arith.constant 0 : i32
    %c0_i32_0 = arith.constant 0 : i32
    %c0_i32_1 = arith.constant 0 : i32
    return %c0_i32, %c0_i32_0 : i32, i32
  }
  func.func @transform_8(%arg0: i32) -> (i32, i32) {
    %c0_i32 = arith.constant 0 : i32
    %c0_i32_0 = arith.constant 0 : i32
    %c0_i32_1 = arith.constant 0 : i32
    return %c0_i32, %c0_i32_0 : i32, i32
  }
  func.func @transform_9(%arg0: i32) -> (i32, i32) {
    %c0_i32 = arith.constant 0 : i32
    %c0_i32_0 = arith.constant 0 : i32
    %c0_i32_1 = arith.constant 0 : i32
    return %c0_i32, %c0_i32_0 : i32, i32
  }
  func.func @transform_10(%arg0: i32) -> (i32, i32) {
    %c0_i32 = arith.constant 0 : i32
    %c0_i32_0 = arith.constant 0 : i32
    %c0_i32_1 = arith.constant 0 : i32
    return %c0_i32, %c0_i32_0 : i32, i32
  }
  func.func @transform_11(%arg0: i32) -> (i32, i32) {
    %c0_i32 = arith.constant 0 : i32
    %c0_i32_0 = arith.constant 0 : i32
    return %arg0, %c0_i32 : i32, i32
  }
}

</mosaic_0001>

<llo_original>
// kernel: lenet_forward.1
$region0: #{lenet_forward.1}
  #allocation0 [shape = 'u32[]', space=smem, size = 0x4, offset = 0x4, fixed_abs, tag = 'smem constant byte address 0x4 - core index']
  #allocation1 [shape = 'u32[144,128]{1,0:T(1,128)}', space=vmem, size = 0x12000, scoped, tag = 'internal scratch']
  %s0 = inlined_call_operand.vmem [shape: f32[2,128], index: 0, kind: input, shape index: {}]
  %s1 = inlined_call_operand.hbm [shape: f32[128,256], index: 1, kind: input, shape index: {}]
  %s2 = inlined_call_operand.vmem [shape: f32[1,256], index: 2, kind: input, shape index: {}]
  %s3 = inlined_call_operand.hbm [shape: f32[256,256], index: 3, kind: input, shape index: {}]
  %s4 = inlined_call_operand.vmem [shape: f32[1,256], index: 4, kind: input, shape index: {}]
  %s5 = inlined_call_operand.hbm [shape: f32[256,128], index: 5, kind: input, shape index: {}]
  %s6 = inlined_call_operand.vmem [shape: f32[1,128], index: 6, kind: input, shape index: {}]
  %s7 = inlined_call_operand.hbm [shape: f32[128,128], index: 7, kind: input, shape index: {}]
  %s8 = inlined_call_operand.vmem [shape: f32[1,128], index: 8, kind: input, shape index: {}]
  %s9 = inlined_call_operand.hbm [shape: f32[128,128], index: 9, kind: input, shape index: {}]
  %s10 = inlined_call_operand.vmem [shape: f32[1,128], index: 10, kind: input, shape index: {}]
  %s11 = inlined_call_operand.hbm [shape: f32[2,128], index: 11, kind: output, shape index: {}]
  %s12 = sld [smem:[#allocation0]]
  $region74: #{lenet_forward.1} parent=0
    _
  %s14 = ssub.s32 1, %s12
  %s15 = scalar_select 0, %s14, %s12
  $region1: #{lenet_forward.1} parent=0
    #allocation2 [shape = 'u8[131072]{0}', space=vmem, size = 0x20000, scoped, tag = 'input window, operand 1, single buffered']
    #allocation3 [shape = 's32[1]{0}', space=sflag, size = 0x4, scoped, tag = 'scoped memory for lenet_forward.1']
    #allocation4 [shape = 's32[1]{0}', space=sflag, size = 0x4, scoped, tag = 'scoped memory for lenet_forward.1']
    #allocation5 [shape = 'u8[262144]{0}', space=vmem, size = 0x40000, scoped, tag = 'input window, operand 3, single buffered']
    #allocation6 [shape = 's32[1]{0}', space=sflag, size = 0x4, scoped, tag = 'scoped memory for lenet_forward.1']
    #allocation7 [shape = 'u8[131072]{0}', space=vmem, size = 0x20000, scoped, tag = 'input window, operand 5, single buffered']
    #allocation8 [shape = 'u8[65536]{0}', space=vmem, size = 0x10000, scoped, tag = 'input window, operand 7, single buffered']
    #allocation9 [shape = 's32[1]{0}', space=sflag, size = 0x4, scoped, tag = 'scoped memory for lenet_forward.1']
    #allocation10 [shape = 'u8[65536]{0}', space=vmem, size = 0x10000, scoped, tag = 'input window, operand 9, single buffered']
    #allocation11 [shape = 'u8[1024]{0}', space=vmem, size = 0x400, scoped, tag = 'output window, operand 0, single buffered']
    %16 = vsyncpa [#allocation3], 0
    %17 = vsyncpa [#allocation6], 0
    %18 = vsyncpa [#allocation9], 0
    %19 = vsyncpa [#allocation4], 0
    // Predicated region
    $region2: #{lenet_forward.1} parent=1 // pred_check
      _
    $region3: #{lenet_forward.1} parent=1 // pred_check_branch
      %21 = sbr.rel (0) target = $region5
    $region4: #{lenet_forward.1} parent=1 // pred_region
      _
    $region5: #{lenet_forward.1} parent=1 // pred_fallthru
      _
    // Predicated region
    $region6: #{lenet_forward.1} parent=1 // pred_check
      _
    $region7: #{lenet_forward.1} parent=1 // pred_check_branch
      %23 = sbr.rel (0) target = $region9
    $region8: #{lenet_forward.1} parent=1 // pred_region
      %s25 = ssub.s32 4096, 4096
      %26 = vsyncadd [#allocation3], %s25
      %s27 = sshll.u32 [#allocation2], 4
      %s28 = int_to_ptr.vmem [resolvable:$true] %s27
      %33 = dma.hbm_to_vmem [thread:$0]  %s1, 4096, %s28, [#allocation3], 256, 256, 16
    $region9: #{lenet_forward.1} parent=1 // pred_fallthru
      _
    // Predicated region
    $region10: #{lenet_forward.1} parent=1 // pred_check
      _
    $region11: #{lenet_forward.1} parent=1 // pred_check_branch
      %35 = sbr.rel (0) target = $region13
    $region12: #{lenet_forward.1} parent=1 // pred_region
      _
    $region13: #{lenet_forward.1} parent=1 // pred_fallthru
      _
    // Predicated region
    $region14: #{lenet_forward.1} parent=1 // pred_check
      _
    $region15: #{lenet_forward.1} parent=1 // pred_check_branch
      %37 = sbr.rel (0) target = $region17
    $region16: #{lenet_forward.1} parent=1 // pred_region
      %s39 = ssub.s32 8192, 8192
      %40 = vsyncadd [#allocation6], %s39
      %s41 = sshll.u32 [#allocation5], 4
      %s42 = int_to_ptr.vmem [resolvable:$true] %s41
      %47 = dma.hbm_to_vmem [thread:$0]  %s3, 8192, %s42, [#allocation6], 256, 256, 16
    $region17: #{lenet_forward.1} parent=1 // pred_fallthru
      _
    // Predicated region
    $region18: #{lenet_forward.1} parent=1 // pred_check
      _
    $region19: #{lenet_forward.1} parent=1 // pred_check_branch
      %49 = sbr.rel (0) target = $region21
    $region20: #{lenet_forward.1} parent=1 // pred_region
      _
    $region21: #{lenet_forward.1} parent=1 // pred_fallthru
      _
    // Predicated region
    $region22: #{lenet_forward.1} parent=1 // pred_check
      _
    $region23: #{lenet_forward.1} parent=1 // pred_check_branch
      %51 = sbr.rel (0) target = $region25
    $region24: #{lenet_forward.1} parent=1 // pred_region
      %s53 = ssub.s32 4096, 4096
      %54 = vsyncadd [#allocation6], %s53
      %s55 = sshll.u32 [#allocation7], 4
      %s56 = int_to_ptr.vmem [resolvable:$true] %s55
      %61 = dma.hbm_to_vmem [thread:$0]  %s5, 4096, %s56, [#allocation6], 128, 128, 8
    $region25: #{lenet_forward.1} parent=1 // pred_fallthru
      _
    // Predicated region
    $region26: #{lenet_forward.1} parent=1 // pred_check
      _
    $region27: #{lenet_forward.1} parent=1 // pred_check_branch
      %63 = sbr.rel (0) target = $region29
    $region28: #{lenet_forward.1} parent=1 // pred_region
      _
    $region29: #{lenet_forward.1} parent=1 // pred_fallthru
      _
    // Predicated region
    $region30: #{lenet_forward.1} parent=1 // pred_check
      _
    $region31: #{lenet_forward.1} parent=1 // pred_check_branch
      %65 = sbr.rel (0) target = $region33
    $region32: #{lenet_forward.1} parent=1 // pred_region
      %s67 = ssub.s32 2048, 2048
      %68 = vsyncadd [#allocation9], %s67
      %s69 = sshll.u32 [#allocation8], 4
      %s70 = int_to_ptr.vmem [resolvable:$true] %s69
      %75 = dma.hbm_to_vmem [thread:$0]  %s7, 2048, %s70, [#allocation9], 128, 128, 8
    $region33: #{lenet_forward.1} parent=1 // pred_fallthru
      _
    // Predicated region
    $region34: #{lenet_forward.1} parent=1 // pred_check
      _
    $region35: #{lenet_forward.1} parent=1 // pred_check_branch
      %77 = sbr.rel (0) target = $region37
    $region36: #{lenet_forward.1} parent=1 // pred_region
      _
    $region37: #{lenet_forward.1} parent=1 // pred_fallthru
      _
    // Predicated region
    $region38: #{lenet_forward.1} parent=1 // pred_check
      _
    $region39: #{lenet_forward.1} parent=1 // pred_check_branch
      %79 = sbr.rel (0) target = $region41
    $region40: #{lenet_forward.1} parent=1 // pred_region
      %s81 = ssub.s32 2048, 2048
      %82 = vsyncadd [#allocation9], %s81
      %s83 = sshll.u32 [#allocation10], 4
      %s84 = int_to_ptr.vmem [resolvable:$true] %s83
      %89 = dma.hbm_to_vmem [thread:$0]  %s9, 2048, %s84, [#allocation9], 128, 128, 8
    $region41: #{lenet_forward.1} parent=1 // pred_fallthru
      _
    // Predicated region
    $region42: #{lenet_forward.1} parent=1 // pred_check
      _
    $region43: #{lenet_forward.1} parent=1 // pred_check_branch
      %91 = sbr.rel (0) target = $region45
    $region44: #{lenet_forward.1} parent=1 // pred_region
      _
    $region45: #{lenet_forward.1} parent=1 // pred_fallthru
      _
    // Predicated region
    $region46: #{lenet_forward.1} parent=1 // pred_check
      _
    $region47: #{lenet_forward.1} parent=1 // pred_check_branch
      %93 = sbr.rel (0) target = $region49
    $region48: #{lenet_forward.1} parent=1 // pred_region
      %94 = dma.done [#allocation3], 4096
    $region49: #{lenet_forward.1} parent=1 // pred_fallthru
      _
    // Predicated region
    $region50: #{lenet_forward.1} parent=1 // pred_check
      _
    $region51: #{lenet_forward.1} parent=1 // pred_check_branch
      %96 = sbr.rel (0) target = $region53
    $region52: #{lenet_forward.1} parent=1 // pred_region
      %97 = dma.done [#allocation6], 8192
    $region53: #{lenet_forward.1} parent=1 // pred_fallthru
      _
    // Predicated region
    $region54: #{lenet_forward.1} parent=1 // pred_check
      _
    $region55: #{lenet_forward.1} parent=1 // pred_check_branch
      %99 = sbr.rel (0) target = $region57
    $region56: #{lenet_forward.1} parent=1 // pred_region
      %100 = dma.done [#allocation6], 4096
    $region57: #{lenet_forward.1} parent=1 // pred_fallthru
      _
    // Predicated region
    $region58: #{lenet_forward.1} parent=1 // pred_check
      _
    $region59: #{lenet_forward.1} parent=1 // pred_check_branch
      %102 = sbr.rel (0) target = $region61
    $region60: #{lenet_forward.1} parent=1 // pred_region
      %103 = dma.done [#allocation9], 2048
    $region61: #{lenet_forward.1} parent=1 // pred_fallthru
      _
    // Predicated region
    $region62: #{lenet_forward.1} parent=1 // pred_check
      _
    $region63: #{lenet_forward.1} parent=1 // pred_check_branch
      %105 = sbr.rel (0) target = $region65
    $region64: #{lenet_forward.1} parent=1 // pred_region
      %106 = dma.done [#allocation9], 2048
    $region65: #{lenet_forward.1} parent=1 // pred_fallthru
      _
    %v107 = vld [vmem:[%s0] sm:$0x3]
    %v108 = vld [vmem:[#allocation2] sm:$0xff]
    %v109 = vld [vmem:[#allocation2 + $0x8] sm:$0xff]
    %v110 = vld [vmem:[#allocation2 + $0x10] sm:$0xff]
    %v111 = vld [vmem:[#allocation2 + $0x18] sm:$0xff]
    %v112 = vld [vmem:[#allocation2 + $0x20] sm:$0xff]
    %v113 = vld [vmem:[#allocation2 + $0x28] sm:$0xff]
    %v114 = vld [vmem:[#allocation2 + $0x30] sm:$0xff]
    %v115 = vld [vmem:[#allocation2 + $0x38] sm:$0xff]
    %v116 = vld [vmem:[#allocation2 + $0x40] sm:$0xff]
    %v117 = vld [vmem:[#allocation2 + $0x48] sm:$0xff]
    %v118 = vld [vmem:[#allocation2 + $0x50] sm:$0xff]
    %v119 = vld [vmem:[#allocation2 + $0x58] sm:$0xff]
    %v120 = vld [vmem:[#allocation2 + $0x60] sm:$0xff]
    %v121 = vld [vmem:[#allocation2 + $0x68] sm:$0xff]
    %v122 = vld [vmem:[#allocation2 + $0x70] sm:$0xff]
    %v123 = vld [vmem:[#allocation2 + $0x78] sm:$0xff]
    %v124 = vld [vmem:[#allocation2 + $0x80] sm:$0xff]
    %v125 = vld [vmem:[#allocation2 + $0x88] sm:$0xff]
    %v126 = vld [vmem:[#allocation2 + $0x90] sm:$0xff]
    %v127 = vld [vmem:[#allocation2 + $0x98] sm:$0xff]
    %v128 = vld [vmem:[#allocation2 + $0xa0] sm:$0xff]
    %v129 = vld [vmem:[#allocation2 + $0xa8] sm:$0xff]
    %v130 = vld [vmem:[#allocation2 + $0xb0] sm:$0xff]
    %v131 = vld [vmem:[#allocation2 + $0xb8] sm:$0xff]
    %v132 = vld [vmem:[#allocation2 + $0xc0] sm:$0xff]
    %v133 = vld [vmem:[#allocation2 + $0xc8] sm:$0xff]
    %v134 = vld [vmem:[#allocation2 + $0xd0] sm:$0xff]
    %v135 = vld [vmem:[#allocation2 + $0xd8] sm:$0xff]
    %v136 = vld [vmem:[#allocation2 + $0xe0] sm:$0xff]
    %v137 = vld [vmem:[#allocation2 + $0xe8] sm:$0xff]
    %v138 = vld [vmem:[#allocation2 + $0xf0] sm:$0xff]
    %v139 = vld [vmem:[#allocation2 + $0xf8] sm:$0xff]
    %v140 = vld [vmem:[%s2] sm:$0x3]
    %v142 = vlaneseq
    %v143 = vshrl.u32 %v142, 7
    %v144 = vsub.s32 0, %v143
    %v145 = vrot.slane %v140, %v144
    %v146 = vlaneseq
    %v147 = vshrl.u32 %v146, 7
    %v148 = vsub.s32 1, %v147
    %v149 = vrot.slane %v140, %v148
    %152 = vmatprep.subr.mxu0 %v139
    %153 = vmatpush1.msra.mxu0 %v138
    %154 = vmatprep.subr.mxu0 %v137
    %155 = vmatpush1.msra.mxu0 %v136
    %156 = vmatprep.subr.mxu0 %v135
    %157 = vmatpush1.msra.mxu0 %v134
    %158 = vmatprep.subr.mxu0 %v133
    %159 = vmatpush1.msra.mxu0 %v132
    %160 = vmatprep.subr.mxu0 %v131
    %161 = vmatpush1.msra.mxu0 %v130
    %162 = vmatprep.subr.mxu0 %v129
    %163 = vmatpush1.msra.mxu0 %v128
    %164 = vmatprep.subr.mxu0 %v127
    %165 = vmatpush1.msra.mxu0 %v126
    %166 = vmatprep.subr.mxu0 %v125
    %167 = vmatpush1.msra.mxu0 %v124
    %168 = vmatprep.subr.mxu0 %v123
    %169 = vmatpush1.msra.mxu0 %v122
    %170 = vmatprep.subr.mxu0 %v121
    %171 = vmatpush1.msra.mxu0 %v120
    %172 = vmatprep.subr.mxu0 %v119
    %173 = vmatpush1.msra.mxu0 %v118
    %174 = vmatprep.subr.mxu0 %v117
    %175 = vmatpush1.msra.mxu0 %v116
    %176 = vmatprep.subr.mxu0 %v115
    %177 = vmatpush1.msra.mxu0 %v114
    %178 = vmatprep.subr.mxu0 %v113
    %179 = vmatpush1.msra.mxu0 %v112
    %180 = vmatprep.subr.mxu0 %v111
    %181 = vmatpush1.msra.mxu0 %v110
    %182 = vmatprep.subr.mxu0 %v109
    %183 = vmatpush1.msra.mxu0 %v108
    %184 = vmatprep.subr.mxu0 0.0
    %185 = vmatpush2.msra.mxu0 0.0
    %186 = vmatprep.subr.mxu0 0.0
    %187 = vmatpush2.msra.mxu0 0.0
    %188 = vmatprep.subr.mxu0 0.0
    %189 = vmatpush2.msra.mxu0 0.0
    %190 = vmatprep.subr.mxu0 0.0
    %191 = vmatpush2.msra.mxu0 0.0
    %192 = vmatprep.subr.mxu0 0.0
    %193 = vmatpush2.msra.mxu0 0.0
    %194 = vmatprep.subr.mxu0 0.0
    %195 = vmatpush2.msra.mxu0 0.0
    %196 = vmatprep.subr.mxu0 0.0
    %197 = vmatpush2.msra.mxu0 0.0
    %198 = vmatprep.subr.mxu0 0.0
    %199 = vmatpush2.msra.mxu0 0.0
    %200 = vmatprep.subr.mxu0 0.0
    %201 = vmatpush2.msra.mxu0 0.0
    %202 = vmatprep.subr.mxu0 0.0
    %203 = vmatpush2.msra.mxu0 0.0
    %204 = vmatprep.subr.mxu0 0.0
    %205 = vmatpush2.msra.mxu0 0.0
    %206 = vmatprep.subr.mxu0 0.0
    %207 = vmatpush2.msra.mxu0 0.0
    %208 = vmatprep.subr.mxu0 0.0
    %209 = vmatpush2.msra.mxu0 0.0
    %210 = vmatprep.subr.mxu0 0.0
    %211 = vmatpush2.msra.mxu0 0.0
    %212 = vmatprep.subr.mxu0 0.0
    %213 = vmatpush2.msra.mxu0 0.0
    %214 = vmatprep.subr.mxu0 0.0
    %215 = vmatpush2.msra.mxu0 0.0
    %216 = vmatprep.mubr.f32.mxu0 0.0
    %217 = vmatmul.mubr.f32.gmra.mxu0 %v107
    %v218 = vpop.f32.mrf.mxu0
    %v219 = vadd.f32 %v145, %v218
    %v220 = vpop.f32.mrf.mxu0
    %v221 = vadd.f32 %v149, %v220
    %222 = vdwg.mxu0
    %v223 = vmul.f32 %v219, 0.5
    %v224 = vmul.f32 %v221, 0.5
    %v225 = vtanh.pop %v223
    %v226 = vtanh.pop %v224
    %v227 = vadd.f32 %v225, 1.0
    %v228 = vadd.f32 %v226, 1.0
    %v229 = vmul.f32 %v227, 0.5
    %v230 = vmul.f32 %v228, 0.5
    %v231 = vld [vmem:[#allocation5] sm:$0xff]
    %v232 = vld [vmem:[#allocation5 + $0x8] sm:$0xff]
    %v233 = vld [vmem:[#allocation5 + $0x10] sm:$0xff]
    %v234 = vld [vmem:[#allocation5 + $0x18] sm:$0xff]
    %v235 = vld [vmem:[#allocation5 + $0x20] sm:$0xff]
    %v236 = vld [vmem:[#allocation5 + $0x28] sm:$0xff]
    %v237 = vld [vmem:[#allocation5 + $0x30] sm:$0xff]
    %v238 = vld [vmem:[#allocation5 + $0x38] sm:$0xff]
    %v239 = vld [vmem:[#allocation5 + $0x40] sm:$0xff]
    %v240 = vld [vmem:[#allocation5 + $0x48] sm:$0xff]
    %v241 = vld [vmem:[#allocation5 + $0x50] sm:$0xff]
    %v242 = vld [vmem:[#allocation5 + $0x58] sm:$0xff]
    %v243 = vld [vmem:[#allocation5 + $0x60] sm:$0xff]
    %v244 = vld [vmem:[#allocation5 + $0x68] sm:$0xff]
    %v245 = vld [vmem:[#allocation5 + $0x70] sm:$0xff]
    %v246 = vld [vmem:[#allocation5 + $0x78] sm:$0xff]
    %v247 = vld [vmem:[#allocation5 + $0x80] sm:$0xff]
    %v248 = vld [vmem:[#allocation5 + $0x88] sm:$0xff]
    %v249 = vld [vmem:[#allocation5 + $0x90] sm:$0xff]
    %v250 = vld [vmem:[#allocation5 + $0x98] sm:$0xff]
    %v251 = vld [vmem:[#allocation5 + $0xa0] sm:$0xff]
    %v252 = vld [vmem:[#allocation5 + $0xa8] sm:$0xff]
    %v253 = vld [vmem:[#allocation5 + $0xb0] sm:$0xff]
    %v254 = vld [vmem:[#allocation5 + $0xb8] sm:$0xff]
    %v255 = vld [vmem:[#allocation5 + $0xc0] sm:$0xff]
    %v256 = vld [vmem:[#allocation5 + $0xc8] sm:$0xff]
    %v257 = vld [vmem:[#allocation5 + $0xd0] sm:$0xff]
    %v258 = vld [vmem:[#allocation5 + $0xd8] sm:$0xff]
    %v259 = vld [vmem:[#allocation5 + $0xe0] sm:$0xff]
    %v260 = vld [vmem:[#allocation5 + $0xe8] sm:$0xff]
    %v261 = vld [vmem:[#allocation5 + $0xf0] sm:$0xff]
    %v262 = vld [vmem:[#allocation5 + $0xf8] sm:$0xff]
    %v263 = vld [vmem:[#allocation5 + $0x100] sm:$0xff]
    %v264 = vld [vmem:[#allocation5 + $0x108] sm:$0xff]
    %v265 = vld [vmem:[#allocation5 + $0x110] sm:$0xff]
    %v266 = vld [vmem:[#allocation5 + $0x118] sm:$0xff]
    %v267 = vld [vmem:[#allocation5 + $0x120] sm:$0xff]
    %v268 = vld [vmem:[#allocation5 + $0x128] sm:$0xff]
    %v269 = vld [vmem:[#allocation5 + $0x130] sm:$0xff]
    %v270 = vld [vmem:[#allocation5 + $0x138] sm:$0xff]
    %v271 = vld [vmem:[#allocation5 + $0x140] sm:$0xff]
    %v272 = vld [vmem:[#allocation5 + $0x148] sm:$0xff]
    %v273 = vld [vmem:[#allocation5 + $0x150] sm:$0xff]
    %v274 = vld [vmem:[#allocation5 + $0x158] sm:$0xff]
    %v275 = vld [vmem:[#allocation5 + $0x160] sm:$0xff]
    %v276 = vld [vmem:[#allocation5 + $0x168] sm:$0xff]
    %v277 = vld [vmem:[#allocation5 + $0x170] sm:$0xff]
    %v278 = vld [vmem:[#allocation5 + $0x178] sm:$0xff]
    %v279 = vld [vmem:[#allocation5 + $0x180] sm:$0xff]
    %v280 = vld [vmem:[#allocation5 + $0x188] sm:$0xff]
    %v281 = vld [vmem:[#allocation5 + $0x190] sm:$0xff]
    %v282 = vld [vmem:[#allocation5 + $0x198] sm:$0xff]
    %v283 = vld [vmem:[#allocation5 + $0x1a0] sm:$0xff]
    %v284 = vld [vmem:[#allocation5 + $0x1a8] sm:$0xff]
    %v285 = vld [vmem:[#allocation5 + $0x1b0] sm:$0xff]
    %v286 = vld [vmem:[#allocation5 + $0x1b8] sm:$0xff]
    %v287 = vld [vmem:[#allocation5 + $0x1c0] sm:$0xff]
    %v288 = vld [vmem:[#allocation5 + $0x1c8] sm:$0xff]
    %v289 = vld [vmem:[#allocation5 + $0x1d0] sm:$0xff]
    %v290 = vld [vmem:[#allocation5 + $0x1d8] sm:$0xff]
    %v291 = vld [vmem:[#allocation5 + $0x1e0] sm:$0xff]
    %v292 = vld [vmem:[#allocation5 + $0x1e8] sm:$0xff]
    %v293 = vld [vmem:[#allocation5 + $0x1f0] sm:$0xff]
    %v294 = vld [vmem:[#allocation5 + $0x1f8] sm:$0xff]
    %v295 = vld [vmem:[%s4] sm:$0x3]
    %v297 = vlaneseq
    %v298 = vshrl.u32 %v297, 7
    %v299 = vsub.s32 0, %v298
    %v300 = vrot.slane %v295, %v299
    %v301 = vlaneseq
    %v302 = vshrl.u32 %v301, 7
    %v303 = vsub.s32 1, %v302
    %v304 = vrot.slane %v295, %v303
    %307 = vmatprep.subr.mxu0 %v262
    %308 = vmatpush1.msra.mxu0 %v261
    %309 = vmatprep.subr.mxu0 %v260
    %310 = vmatpush1.msra.mxu0 %v259
    %311 = vmatprep.subr.mxu0 %v258
    %312 = vmatpush1.msra.mxu0 %v257
    %313 = vmatprep.subr.mxu0 %v256
    %314 = vmatpush1.msra.mxu0 %v255
    %315 = vmatprep.subr.mxu0 %v254
    %316 = vmatpush1.msra.mxu0 %v253
    %317 = vmatprep.subr.mxu0 %v252
    %318 = vmatpush1.msra.mxu0 %v251
    %319 = vmatprep.subr.mxu0 %v250
    %320 = vmatpush1.msra.mxu0 %v249
    %321 = vmatprep.subr.mxu0 %v248
    %322 = vmatpush1.msra.mxu0 %v247
    %323 = vmatprep.subr.mxu0 %v246
    %324 = vmatpush1.msra.mxu0 %v245
    %325 = vmatprep.subr.mxu0 %v244
    %326 = vmatpush1.msra.mxu0 %v243
    %327 = vmatprep.subr.mxu0 %v242
    %328 = vmatpush1.msra.mxu0 %v241
    %329 = vmatprep.subr.mxu0 %v240
    %330 = vmatpush1.msra.mxu0 %v239
    %331 = vmatprep.subr.mxu0 %v238
    %332 = vmatpush1.msra.mxu0 %v237
    %333 = vmatprep.subr.mxu0 %v236
    %334 = vmatpush1.msra.mxu0 %v235
    %335 = vmatprep.subr.mxu0 %v234
    %336 = vmatpush1.msra.mxu0 %v233
    %337 = vmatprep.subr.mxu0 %v232
    %338 = vmatpush1.msra.mxu0 %v231
    %339 = vmatprep.subr.mxu0 %v294
    %340 = vmatpush2.msra.mxu0 %v293
    %341 = vmatprep.subr.mxu0 %v292
    %342 = vmatpush2.msra.mxu0 %v291
    %343 = vmatprep.subr.mxu0 %v290
    %344 = vmatpush2.msra.mxu0 %v289
    %345 = vmatprep.subr.mxu0 %v288
    %346 = vmatpush2.msra.mxu0 %v287
    %347 = vmatprep.subr.mxu0 %v286
    %348 = vmatpush2.msra.mxu0 %v285
    %349 = vmatprep.subr.mxu0 %v284
    %350 = vmatpush2.msra.mxu0 %v283
    %351 = vmatprep.subr.mxu0 %v282
    %352 = vmatpush2.msra.mxu0 %v281
    %353 = vmatprep.subr.mxu0 %v280
    %354 = vmatpush2.msra.mxu0 %v279
    %355 = vmatprep.subr.mxu0 %v278
    %356 = vmatpush2.msra.mxu0 %v277
    %357 = vmatprep.subr.mxu0 %v276
    %358 = vmatpush2.msra.mxu0 %v275
    %359 = vmatprep.subr.mxu0 %v274
    %360 = vmatpush2.msra.mxu0 %v273
    %361 = vmatprep.subr.mxu0 %v272
    %362 = vmatpush2.msra.mxu0 %v271
    %363 = vmatprep.subr.mxu0 %v270
    %364 = vmatpush2.msra.mxu0 %v269
    %365 = vmatprep.subr.mxu0 %v268
    %366 = vmatpush2.msra.mxu0 %v267
    %367 = vmatprep.subr.mxu0 %v266
    %368 = vmatpush2.msra.mxu0 %v265
    %369 = vmatprep.subr.mxu0 %v264
    %370 = vmatpush2.msra.mxu0 %v263
    %371 = vmatprep.mubr.f32.mxu0 %v230
    %372 = vmatmul.mubr.f32.gmra.mxu0 %v229
    %v373 = vpop.f32.mrf.mxu0
    %v374 = vadd.f32 %v300, %v373
    %v375 = vpop.f32.mrf.mxu0
    %v376 = vadd.f32 %v304, %v375
    %377 = vdwg.mxu0
    %v378 = vmul.f32 %v374, 0.5
    %v379 = vmul.f32 %v376, 0.5
    %v380 = vtanh.pop %v378
    %v381 = vtanh.pop %v379
    %v382 = vadd.f32 %v380, 1.0
    %v383 = vadd.f32 %v381, 1.0
    %v384 = vmul.f32 %v382, 0.5
    %v385 = vmul.f32 %v383, 0.5
    %v386 = vld [vmem:[#allocation7] sm:$0xff]
    %v387 = vld [vmem:[#allocation7 + $0x8] sm:$0xff]
    %v388 = vld [vmem:[#allocation7 + $0x10] sm:$0xff]
    %v389 = vld [vmem:[#allocation7 + $0x18] sm:$0xff]
    %v390 = vld [vmem:[#allocation7 + $0x20] sm:$0xff]
    %v391 = vld [vmem:[#allocation7 + $0x28] sm:$0xff]
    %v392 = vld [vmem:[#allocation7 + $0x30] sm:$0xff]
    %v393 = vld [vmem:[#allocation7 + $0x38] sm:$0xff]
    %v394 = vld [vmem:[#allocation7 + $0x40] sm:$0xff]
    %v395 = vld [vmem:[#allocation7 + $0x48] sm:$0xff]
    %v396 = vld [vmem:[#allocation7 + $0x50] sm:$0xff]
    %v397 = vld [vmem:[#allocation7 + $0x58] sm:$0xff]
    %v398 = vld [vmem:[#allocation7 + $0x60] sm:$0xff]
    %v399 = vld [vmem:[#allocation7 + $0x68] sm:$0xff]
    %v400 = vld [vmem:[#allocation7 + $0x70] sm:$0xff]
    %v401 = vld [vmem:[#allocation7 + $0x78] sm:$0xff]
    %v402 = vld [vmem:[#allocation7 + $0x80] sm:$0xff]
    %v403 = vld [vmem:[#allocation7 + $0x88] sm:$0xff]
    %v404 = vld [vmem:[#allocation7 + $0x90] sm:$0xff]
    %v405 = vld [vmem:[#allocation7 + $0x98] sm:$0xff]
    %v406 = vld [vmem:[#allocation7 + $0xa0] sm:$0xff]
    %v407 = vld [vmem:[#allocation7 + $0xa8] sm:$0xff]
    %v408 = vld [vmem:[#allocation7 + $0xb0] sm:$0xff]
    %v409 = vld [vmem:[#allocation7 + $0xb8] sm:$0xff]
    %v410 = vld [vmem:[#allocation7 + $0xc0] sm:$0xff]
    %v411 = vld [vmem:[#allocation7 + $0xc8] sm:$0xff]
    %v412 = vld [vmem:[#allocation7 + $0xd0] sm:$0xff]
    %v413 = vld [vmem:[#allocation7 + $0xd8] sm:$0xff]
    %v414 = vld [vmem:[#allocation7 + $0xe0] sm:$0xff]
    %v415 = vld [vmem:[#allocation7 + $0xe8] sm:$0xff]
    %v416 = vld [vmem:[#allocation7 + $0xf0] sm:$0xff]
    %v417 = vld [vmem:[#allocation7 + $0xf8] sm:$0xff]
    %v418 = vld [vmem:[%s6] sm:$0x1]
    %v420 = vlaneseq
    %v421 = vshrl.u32 %v420, 7
    %v422 = vsub.s32 0, %v421
    %v423 = vrot.slane %v418, %v422
    %425 = vmatprep.subr.mxu0 0.0
    %426 = vmatpush1.msra.mxu0 %v401
    %427 = vmatprep.subr.mxu0 0.0
    %428 = vmatpush1.msra.mxu0 %v400
    %429 = vmatprep.subr.mxu0 0.0
    %430 = vmatpush1.msra.mxu0 %v399
    %431 = vmatprep.subr.mxu0 0.0
    %432 = vmatpush1.msra.mxu0 %v398
    %433 = vmatprep.subr.mxu0 0.0
    %434 = vmatpush1.msra.mxu0 %v397
    %435 = vmatprep.subr.mxu0 0.0
    %436 = vmatpush1.msra.mxu0 %v396
    %437 = vmatprep.subr.mxu0 0.0
    %438 = vmatpush1.msra.mxu0 %v395
    %439 = vmatprep.subr.mxu0 0.0
    %440 = vmatpush1.msra.mxu0 %v394
    %441 = vmatprep.subr.mxu0 0.0
    %442 = vmatpush1.msra.mxu0 %v393
    %443 = vmatprep.subr.mxu0 0.0
    %444 = vmatpush1.msra.mxu0 %v392
    %445 = vmatprep.subr.mxu0 0.0
    %446 = vmatpush1.msra.mxu0 %v391
    %447 = vmatprep.subr.mxu0 0.0
    %448 = vmatpush1.msra.mxu0 %v390
    %449 = vmatprep.subr.mxu0 0.0
    %450 = vmatpush1.msra.mxu0 %v389
    %451 = vmatprep.subr.mxu0 0.0
    %452 = vmatpush1.msra.mxu0 %v388
    %453 = vmatprep.subr.mxu0 0.0
    %454 = vmatpush1.msra.mxu0 %v387
    %455 = vmatprep.subr.mxu0 0.0
    %456 = vmatpush1.msra.mxu0 %v386
    %457 = vmatprep.subr.mxu0 0.0
    %458 = vmatpush2.msra.mxu0 %v417
    %459 = vmatprep.subr.mxu0 0.0
    %460 = vmatpush2.msra.mxu0 %v416
    %461 = vmatprep.subr.mxu0 0.0
    %462 = vmatpush2.msra.mxu0 %v415
    %463 = vmatprep.subr.mxu0 0.0
    %464 = vmatpush2.msra.mxu0 %v414
    %465 = vmatprep.subr.mxu0 0.0
    %466 = vmatpush2.msra.mxu0 %v413
    %467 = vmatprep.subr.mxu0 0.0
    %468 = vmatpush2.msra.mxu0 %v412
    %469 = vmatprep.subr.mxu0 0.0
    %470 = vmatpush2.msra.mxu0 %v411
    %471 = vmatprep.subr.mxu0 0.0
    %472 = vmatpush2.msra.mxu0 %v410
    %473 = vmatprep.subr.mxu0 0.0
    %474 = vmatpush2.msra.mxu0 %v409
    %475 = vmatprep.subr.mxu0 0.0
    %476 = vmatpush2.msra.mxu0 %v408
    %477 = vmatprep.subr.mxu0 0.0
    %478 = vmatpush2.msra.mxu0 %v407
    %479 = vmatprep.subr.mxu0 0.0
    %480 = vmatpush2.msra.mxu0 %v406
    %481 = vmatprep.subr.mxu0 0.0
    %482 = vmatpush2.msra.mxu0 %v405
    %483 = vmatprep.subr.mxu0 0.0
    %484 = vmatpush2.msra.mxu0 %v404
    %485 = vmatprep.subr.mxu0 0.0
    %486 = vmatpush2.msra.mxu0 %v403
    %487 = vmatprep.subr.mxu0 0.0
    %488 = vmatpush2.msra.mxu0 %v402
    %489 = vmatprep.mubr.f32.mxu0 %v385
    %490 = vmatmul.mubr.f32.gmra.mxu0 %v384
    %v491 = vpop.f32.mrf.mxu0
    %v492 = vadd.f32 %v423, %v491
    %v493 = vpop.f32.mrf.mxu0
    %494 = vdwg.mxu0
    %v495 = vmul.f32 %v492, 0.5
    %v496 = vtanh.pop %v495
    %v497 = vadd.f32 %v496, 1.0
    %v498 = vmul.f32 %v497, 0.5
    %v499 = vld [vmem:[#allocation8] sm:$0xff]
    %v500 = vld [vmem:[#allocation8 + $0x8] sm:$0xff]
    %v501 = vld [vmem:[#allocation8 + $0x10] sm:$0xff]
    %v502 = vld [vmem:[#allocation8 + $0x18] sm:$0xff]
    %v503 = vld [vmem:[#allocation8 + $0x20] sm:$0xff]
    %v504 = vld [vmem:[#allocation8 + $0x28] sm:$0xff]
    %v505 = vld [vmem:[#allocation8 + $0x30] sm:$0xff]
    %v506 = vld [vmem:[#allocation8 + $0x38] sm:$0xff]
    %v507 = vld [vmem:[#allocation8 + $0x40] sm:$0xff]
    %v508 = vld [vmem:[#allocation8 + $0x48] sm:$0xff]
    %v509 = vld [vmem:[#allocation8 + $0x50] sm:$0xff]
    %v510 = vld [vmem:[#allocation8 + $0x58] sm:$0xff]
    %v511 = vld [vmem:[#allocation8 + $0x60] sm:$0xff]
    %v512 = vld [vmem:[#allocation8 + $0x68] sm:$0xff]
    %v513 = vld [vmem:[#allocation8 + $0x70] sm:$0xff]
    %v514 = vld [vmem:[#allocation8 + $0x78] sm:$0xff]
    %v515 = vld [vmem:[%s8] sm:$0x1]
    %v517 = vlaneseq
    %v518 = vshrl.u32 %v517, 7
    %v519 = vsub.s32 0, %v518
    %v520 = vrot.slane %v515, %v519
    %522 = vmatprep.subr.mxu0 0.0
    %523 = vmatpush1.msra.mxu0 %v514
    %524 = vmatprep.subr.mxu0 0.0
    %525 = vmatpush1.msra.mxu0 %v513
    %526 = vmatprep.subr.mxu0 0.0
    %527 = vmatpush1.msra.mxu0 %v512
    %528 = vmatprep.subr.mxu0 0.0
    %529 = vmatpush1.msra.mxu0 %v511
    %530 = vmatprep.subr.mxu0 0.0
    %531 = vmatpush1.msra.mxu0 %v510
    %532 = vmatprep.subr.mxu0 0.0
    %533 = vmatpush1.msra.mxu0 %v509
    %534 = vmatprep.subr.mxu0 0.0
    %535 = vmatpush1.msra.mxu0 %v508
    %536 = vmatprep.subr.mxu0 0.0
    %537 = vmatpush1.msra.mxu0 %v507
    %538 = vmatprep.subr.mxu0 0.0
    %539 = vmatpush1.msra.mxu0 %v506
    %540 = vmatprep.subr.mxu0 0.0
    %541 = vmatpush1.msra.mxu0 %v505
    %542 = vmatprep.subr.mxu0 0.0
    %543 = vmatpush1.msra.mxu0 %v504
    %544 = vmatprep.subr.mxu0 0.0
    %545 = vmatpush1.msra.mxu0 %v503
    %546 = vmatprep.subr.mxu0 0.0
    %547 = vmatpush1.msra.mxu0 %v502
    %548 = vmatprep.subr.mxu0 0.0
    %549 = vmatpush1.msra.mxu0 %v501
    %550 = vmatprep.subr.mxu0 0.0
    %551 = vmatpush1.msra.mxu0 %v500
    %552 = vmatprep.subr.mxu0 0.0
    %553 = vmatpush1.msra.mxu0 %v499
    %554 = vmatprep.subr.mxu0 0.0
    %555 = vmatpush2.msra.mxu0 0.0
    %556 = vmatprep.subr.mxu0 0.0
    %557 = vmatpush2.msra.mxu0 0.0
    %558 = vmatprep.subr.mxu0 0.0
    %559 = vmatpush2.msra.mxu0 0.0
    %560 = vmatprep.subr.mxu0 0.0
    %561 = vmatpush2.msra.mxu0 0.0
    %562 = vmatprep.subr.mxu0 0.0
    %563 = vmatpush2.msra.mxu0 0.0
    %564 = vmatprep.subr.mxu0 0.0
    %565 = vmatpush2.msra.mxu0 0.0
    %566 = vmatprep.subr.mxu0 0.0
    %567 = vmatpush2.msra.mxu0 0.0
    %568 = vmatprep.subr.mxu0 0.0
    %569 = vmatpush2.msra.mxu0 0.0
    %570 = vmatprep.subr.mxu0 0.0
    %571 = vmatpush2.msra.mxu0 0.0
    %572 = vmatprep.subr.mxu0 0.0
    %573 = vmatpush2.msra.mxu0 0.0
    %574 = vmatprep.subr.mxu0 0.0
    %575 = vmatpush2.msra.mxu0 0.0
    %576 = vmatprep.subr.mxu0 0.0
    %577 = vmatpush2.msra.mxu0 0.0
    %578 = vmatprep.subr.mxu0 0.0
    %579 = vmatpush2.msra.mxu0 0.0
    %580 = vmatprep.subr.mxu0 0.0
    %581 = vmatpush2.msra.mxu0 0.0
    %582 = vmatprep.subr.mxu0 0.0
    %583 = vmatpush2.msra.mxu0 0.0
    %584 = vmatprep.subr.mxu0 0.0
    %585 = vmatpush2.msra.mxu0 0.0
    %586 = vmatprep.mubr.f32.mxu0 0.0
    %587 = vmatmul.mubr.f32.gmra.mxu0 %v498
    %v588 = vpop.f32.mrf.mxu0
    %v589 = vadd.f32 %v520, %v588
    %v590 = vpop.f32.mrf.mxu0
    %591 = vdwg.mxu0
    %v592 = vmul.f32 %v589, 0.5
    %v593 = vtanh.pop %v592
    %v594 = vadd.f32 %v593, 1.0
    %v595 = vmul.f32 %v594, 0.5
    %v596 = vld [vmem:[#allocation10] sm:$0xff]
    %v597 = vld [vmem:[#allocation10 + $0x8] sm:$0xff]
    %v598 = vld [vmem:[#allocation10 + $0x10] sm:$0xff]
    %v599 = vld [vmem:[#allocation10 + $0x18] sm:$0xff]
    %v600 = vld [vmem:[#allocation10 + $0x20] sm:$0xff]
    %v601 = vld [vmem:[#allocation10 + $0x28] sm:$0xff]
    %v602 = vld [vmem:[#allocation10 + $0x30] sm:$0xff]
    %v603 = vld [vmem:[#allocation10 + $0x38] sm:$0xff]
    %v604 = vld [vmem:[#allocation10 + $0x40] sm:$0xff]
    %v605 = vld [vmem:[#allocation10 + $0x48] sm:$0xff]
    %v606 = vld [vmem:[#allocation10 + $0x50] sm:$0xff]
    %v607 = vld [vmem:[#allocation10 + $0x58] sm:$0xff]
    %v608 = vld [vmem:[#allocation10 + $0x60] sm:$0xff]
    %v609 = vld [vmem:[#allocation10 + $0x68] sm:$0xff]
    %v610 = vld [vmem:[#allocation10 + $0x70] sm:$0xff]
    %v611 = vld [vmem:[#allocation10 + $0x78] sm:$0xff]
    %v612 = vld [vmem:[%s10] sm:$0x1]
    %v614 = vlaneseq
    %v615 = vshrl.u32 %v614, 7
    %v616 = vsub.s32 0, %v615
    %v617 = vrot.slane %v612, %v616
    %619 = vmatprep.subr.mxu0 0.0
    %620 = vmatpush1.msra.mxu0 %v611
    %621 = vmatprep.subr.mxu0 0.0
    %622 = vmatpush1.msra.mxu0 %v610
    %623 = vmatprep.subr.mxu0 0.0
    %624 = vmatpush1.msra.mxu0 %v609
    %625 = vmatprep.subr.mxu0 0.0
    %626 = vmatpush1.msra.mxu0 %v608
    %627 = vmatprep.subr.mxu0 0.0
    %628 = vmatpush1.msra.mxu0 %v607
    %629 = vmatprep.subr.mxu0 0.0
    %630 = vmatpush1.msra.mxu0 %v606
    %631 = vmatprep.subr.mxu0 0.0
    %632 = vmatpush1.msra.mxu0 %v605
    %633 = vmatprep.subr.mxu0 0.0
    %634 = vmatpush1.msra.mxu0 %v604
    %635 = vmatprep.subr.mxu0 0.0
    %636 = vmatpush1.msra.mxu0 %v603
    %637 = vmatprep.subr.mxu0 0.0
    %638 = vmatpush1.msra.mxu0 %v602
    %639 = vmatprep.subr.mxu0 0.0
    %640 = vmatpush1.msra.mxu0 %v601
    %641 = vmatprep.subr.mxu0 0.0
    %642 = vmatpush1.msra.mxu0 %v600
    %643 = vmatprep.subr.mxu0 0.0
    %644 = vmatpush1.msra.mxu0 %v599
    %645 = vmatprep.subr.mxu0 0.0
    %646 = vmatpush1.msra.mxu0 %v598
    %647 = vmatprep.subr.mxu0 0.0
    %648 = vmatpush1.msra.mxu0 %v597
    %649 = vmatprep.subr.mxu0 0.0
    %650 = vmatpush1.msra.mxu0 %v596
    %651 = vmatprep.subr.mxu0 0.0
    %652 = vmatpush2.msra.mxu0 0.0
    %653 = vmatprep.subr.mxu0 0.0
    %654 = vmatpush2.msra.mxu0 0.0
    %655 = vmatprep.subr.mxu0 0.0
    %656 = vmatpush2.msra.mxu0 0.0
    %657 = vmatprep.subr.mxu0 0.0
    %658 = vmatpush2.msra.mxu0 0.0
    %659 = vmatprep.subr.mxu0 0.0
    %660 = vmatpush2.msra.mxu0 0.0
    %661 = vmatprep.subr.mxu0 0.0
    %662 = vmatpush2.msra.mxu0 0.0
    %663 = vmatprep.subr.mxu0 0.0
    %664 = vmatpush2.msra.mxu0 0.0
    %665 = vmatprep.subr.mxu0 0.0
    %666 = vmatpush2.msra.mxu0 0.0
    %667 = vmatprep.subr.mxu0 0.0
    %668 = vmatpush2.msra.mxu0 0.0
    %669 = vmatprep.subr.mxu0 0.0
    %670 = vmatpush2.msra.mxu0 0.0
    %671 = vmatprep.subr.mxu0 0.0
    %672 = vmatpush2.msra.mxu0 0.0
    %673 = vmatprep.subr.mxu0 0.0
    %674 = vmatpush2.msra.mxu0 0.0
    %675 = vmatprep.subr.mxu0 0.0
    %676 = vmatpush2.msra.mxu0 0.0
    %677 = vmatprep.subr.mxu0 0.0
    %678 = vmatpush2.msra.mxu0 0.0
    %679 = vmatprep.subr.mxu0 0.0
    %680 = vmatpush2.msra.mxu0 0.0
    %681 = vmatprep.subr.mxu0 0.0
    %682 = vmatpush2.msra.mxu0 0.0
    %683 = vmatprep.mubr.f32.mxu0 0.0
    %684 = vmatmul.mubr.f32.gmra.mxu0 %v595
    %v685 = vpop.f32.mrf.mxu0
    %v686 = vadd.f32 %v617, %v685
    %v687 = vpop.f32.mrf.mxu0
    %688 = vdwg.mxu0
    %689 = vst [vmem:[#allocation11] sm:$0x3] %v686
    // Predicated region
    $region66: #{lenet_forward.1} parent=1 // pred_check
      _
    $region67: #{lenet_forward.1} parent=1 // pred_check_branch
      %691 = sbr.rel (0) target = $region69
    $region68: #{lenet_forward.1} parent=1 // pred_region
      %s693 = ssub.s32 32, 32
      %694 = vsyncadd [#allocation4], %s693
      %s696 = sshll.u32 [#allocation11], 4
      %s697 = int_to_ptr.vmem [resolvable:$true] %s696
      %699 = dma.vmem_to_hbm [thread:$0]  %s697, 32, %s11, [#allocation4]
    $region69: #{lenet_forward.1} parent=1 // pred_fallthru
      _
    // Predicated region
    $region70: #{lenet_forward.1} parent=1 // pred_check
      _
    $region71: #{lenet_forward.1} parent=1 // pred_check_branch
      %701 = sbr.rel (0) target = $region73
    $region72: #{lenet_forward.1} parent=1 // pred_region
      %702 = dma.done [#allocation4], 32
    $region73: #{lenet_forward.1} parent=1 // pred_fallthru
      _
    %703 = vsyncpa [#allocation3], 1
    %704 = vsyncpa [#allocation6], 1
    %705 = vsyncpa [#allocation9], 1
    %706 = vsyncpa [#allocation4], 1

</llo_original>
